<compile_context>
chip_gen: v5e
topology: v5e:2x2
jax: 0.10.0
libtpu: 0.0.40
codegen_flags: <defaults>
</compile_context>

<pallas_src>
import math

import jax
import jax.numpy as jnp
from jax.experimental import pallas as pl
from jax.experimental.pallas import tpu as pltpu


def _round_up(x, m):
    return (x + m - 1) // m * m


# --------------------------------------------------------------------------
# Kernel: one (row-tile i, reduction-tile k) step of  out = A_hat @ H + bias.
# --------------------------------------------------------------------------
def gcn_agg_kernel(a_ref, h_ref, b_ref, o_ref, acc_ref):
    k = pl.program_id(1)

    @pl.when(k == 0)
    def _():
        acc_ref[...] = jnp.zeros_like(acc_ref)

    # acc += A_hat[i, k] @ H[k]   (bf16 MXU inputs, f32 accumulate)
    acc_ref[...] += jnp.dot(
        a_ref[...], h_ref[...], preferred_element_type=jnp.float32
    )

    @pl.when(k == pl.num_programs(1) - 1)
    def _():
        o_ref[...] = (acc_ref[...] + b_ref[...]).astype(o_ref.dtype)


# --------------------------------------------------------------------------
# Tile / VMEM-budget selection (generation-safe).
# --------------------------------------------------------------------------
def _vmem_limit_bytes():
    """Conservative on v7x (64 MiB physical), generous on v5e/v6e (128 MiB)."""
    try:
        cap = pltpu.get_tpu_info().vmem_capacity_bytes
        if cap >= 128 * 1024 * 1024:
            return 96 * 1024 * 1024
    except Exception:  # pragma: no cover - fall through to the safe default
        pass
    return 48 * 1024 * 1024


def _pick_tiles(n_p, f_out_p, vmem_budget):
    """tm/tk must divide n_p; tk must be a multiple of 128; fit the budget."""

    def footprint(tm, tk):
        return (
            2 * tm * tk * 2            # A_hat tiles (bf16, double-buffered)
            + 2 * tk * f_out_p * 2     # H tiles (bf16, double-buffered)
            + tm * f_out_p * 4         # f32 accumulator
            + 2 * tm * f_out_p * 4     # output tiles (f32, double-buffered)
        )

    tm_cands = [t for t in (512, 256, 128) if n_p % t == 0]
    tm = tm_cands[0]
    # Prefer grid[0] >= 2 so v7x can shard the parallel axis across both TCs.
    for t in tm_cands:
        if n_p // t >= 2:
            tm = t
            break

    tk_cands = sorted(
        {d for d in range(128, min(n_p, 4096) + 1, 128) if n_p % d == 0},
        reverse=True,
    )
    tk = tk_cands[-1]
    for cand in tk_cands:
        if footprint(tm, cand) <= vmem_budget:
            tk = cand
            break
    return tm, tk


# --------------------------------------------------------------------------
# Forward: out = A_hat @ (x @ weight) + bias  via the tiled Pallas kernel.
# --------------------------------------------------------------------------
def gcn_forward(a_hat_p, x, weight, bias):
    """a_hat_p: padded (N_p, N_p) bf16 normalized adjacency."""
    N, F_in = x.shape
    F_out = weight.shape[1]
    N_p = a_hat_p.shape[0]
    F_out_p = _round_up(F_out, 128)

    # Hoisted feature transform (tiny matmul, done once in f32 by XLA).
    h = jnp.dot(x.astype(jnp.float32), weight.astype(jnp.float32))
    h_p = (
        jnp.zeros((N_p, F_out_p), jnp.bfloat16)
        .at[:N, :F_out]
        .set(h.astype(jnp.bfloat16))
    )
    b_p = jnp.zeros((1, F_out_p), jnp.float32).at[0, :F_out].set(
        bias.astype(jnp.float32)
    )

    vmem_limit = _vmem_limit_bytes()
    tm, tk = _pick_tiles(N_p, F_out_p, vmem_budget=min(vmem_limit - 8 * 1024 * 1024,
                                                       40 * 1024 * 1024))
    grid = (N_p // tm, N_p // tk)

    flops = 2 * N_p * N_p * F_out_p
    bytes_accessed = (
        N_p * N_p * 2                    # A_hat (bf16), streamed once
        + grid[0] * N_p * F_out_p * 2    # H (bf16), re-streamed per row tile
        + N_p * F_out_p * 4              # output (f32)
        + F_out_p * 4                    # bias
    )

    out_p = pl.pallas_call(
        gcn_agg_kernel,
        out_shape=jax.ShapeDtypeStruct((N_p, F_out_p), jnp.float32),
        grid_spec=pltpu.PrefetchScalarGridSpec(
            num_scalar_prefetch=0,
            grid=grid,
            in_specs=[
                pl.BlockSpec((tm, tk), lambda i, k: (i, k)),            # A_hat tile
                pl.BlockSpec((tk, F_out_p), lambda i, k: (k, 0)),       # H tile
                pl.BlockSpec((1, F_out_p), lambda i, k: (0, 0)),        # bias
            ],
            out_specs=pl.BlockSpec((tm, F_out_p), lambda i, k: (i, 0)),
            scratch_shapes=[pltpu.VMEM((tm, F_out_p), jnp.float32)],
        ),
        compiler_params=pltpu.CompilerParams(
            dimension_semantics=("parallel", "arbitrary"),
            vmem_limit_bytes=vmem_limit,
        ),
        cost_estimate=pl.CostEstimate(
            flops=flops, transcendentals=0, bytes_accessed=bytes_accessed
        ),
    )(a_hat_p, h_p, b_p)

    return out_p[:N, :F_out]


def gcn_norm_dense_padded(edge_index, num_nodes, num_nodes_padded,
                          dtype=jnp.bfloat16):
    """Dense symmetric-normalized adjacency (with self-loops), built directly
    at padded shape to avoid an extra full N^2 pad+copy pass.

    A_hat[dst, src] = deg^-1/2[dst] * deg^-1/2[src].
    # TODO(synk): PyG uses add_remaining_self_loops; a graph whose edge_index
    #             already contains self-loops would differ (weight 2 vs 1).
    """
    src, dst = edge_index[0], edge_index[1]
    a = jnp.zeros((num_nodes_padded, num_nodes_padded), jnp.float32)
    a = a.at[dst, src].add(1.0)
    idx = jnp.arange(num_nodes)
    a = a.at[idx, idx].add(1.0)                 # self-loops on real nodes only
    deg = a.sum(axis=1)
    safe = jnp.where(deg > 0.0, deg, 1.0)
    dinv = jnp.where(deg > 0.0, 1.0 / jnp.sqrt(safe), 0.0)
    return (dinv[:, None] * a * dinv[None, :]).astype(dtype)


class LinearEncoder:
    """JAX/Pallas port of LinearEncoder(in_channels, out_channels)."""

    def __init__(self, in_channels, out_channels, key):
        # GCNConv defaults: glorot weight, zero bias.
        limit = math.sqrt(6.0 / (in_channels + out_channels))
        self.weight = jax.random.uniform(
            key, (in_channels, out_channels), jnp.float32, -limit, limit
        )
        self.bias = jnp.zeros((out_channels,), jnp.float32)

    def __call__(self, x, edge_index):
        N = x.shape[0]
        N_p = _round_up(max(N, 256), 256)     # decoupled from tk (quadratic cost)
        a_hat_p = gcn_norm_dense_padded(edge_index, N, N_p, dtype=jnp.bfloat16)
        return gcn_forward(a_hat_p, x, self.weight, self.bias)


if __name__ == "__main__":
    key = jax.random.PRNGKey(0)
    k_x, k_e, k_w = jax.random.split(key, 3)

    N, F_in, F_out, E = 16, 8, 32, 40  # small graph: 16 nodes, 40 random edges
    x = jax.random.normal(k_x, (N, F_in), jnp.float32)
    edge_index = jax.random.randint(k_e, (2, E), 0, N, dtype=jnp.int32)

    encoder = LinearEncoder(F_in, F_out, k_w)
    out = encoder(x, edge_index)
    out = jax.block_until_ready(out)

    # Pure-JAX f32 reference (kernel uses bf16 MXU inputs -> loose tolerance).
    a_hat_ref = gcn_norm_dense_padded(edge_index, N, N, dtype=jnp.float32)
    ref = a_hat_ref @ (x @ encoder.weight) + encoder.bias[None, :]
    assert out.shape == (N, F_out)
    assert jnp.allclose(out, ref, atol=5e-2, rtol=5e-2), float(
        jnp.max(jnp.abs(out - ref))
    )

    print("KERNEL_OK")
</pallas_src>

<mosaic_0001>
module attributes {stable_mosaic.version = 11 : i64} {
  func.func @gcn_agg_kernel(%arg0: i32, %arg1: i32, %arg2: memref<128x256xbf16, #tpu.memory_space<vmem>>, %arg3: memref<256x128xbf16, #tpu.memory_space<vmem>>, %arg4: memref<1x128xf32, #tpu.memory_space<vmem>>, %arg5: memref<128x128xf32, #tpu.memory_space<vmem>>, %arg6: memref<128x128xf32, #tpu.memory_space<vmem>>) attributes {dimension_semantics = [#tpu.dimension_semantics<parallel>, #tpu.dimension_semantics<arbitrary>], iteration_bounds = array<i64: 2, 1>, scalar_prefetch = 0 : i64, scratch_operands = 1 : i64, tpu.core_type = #tpu.core_type<tc>, window_params = [{transform_indices = @transform_0, window_bounds = array<i64: 128, 256>}, {transform_indices = @transform_1, window_bounds = array<i64: 256, 128>}, {pipeline_mode = #tpu.pipeline_mode<synchronous>, transform_indices = @transform_2, window_bounds = array<i64: 1, 128>}, {transform_indices = @transform_3, window_bounds = array<i64: 128, 128>}]} {
    %c0_i32 = arith.constant 0 : i32
    %0 = arith.cmpi eq, %arg1, %c0_i32 : i32
    %1 = arith.extui %0 : i1 to i32
    %c0_i32_0 = arith.constant 0 : i32
    %2 = arith.cmpi ne, %1, %c0_i32_0 : i32
    scf.if %2 {
      %cst_10 = arith.constant 0.000000e+00 : f32
      %12 = vector.broadcast %cst_10 : f32 to vector<128x128xf32>
      %c0_11 = arith.constant 0 : index
      %c0_12 = arith.constant 0 : index
      %13 = vector.load %arg6[%c0_11, %c0_12] : memref<128x128xf32, #tpu.memory_space<vmem>>, vector<128x128xf32>
      tpu.vector_store %arg6[%c0_11, %c0_12], %12 {strides = array<i32>} : memref<128x128xf32, #tpu.memory_space<vmem>>, vector<128x128xf32>,
    } else {
    }
    %c0 = arith.constant 0 : index
    %c0_1 = arith.constant 0 : index
    %3 = vector.load %arg6[%c0, %c0_1] : memref<128x128xf32, #tpu.memory_space<vmem>>, vector<128x128xf32>
    %c0_2 = arith.constant 0 : index
    %c0_3 = arith.constant 0 : index
    %4 = vector.load %arg2[%c0_2, %c0_3] : memref<128x256xbf16, #tpu.memory_space<vmem>>, vector<128x256xbf16>
    %c0_4 = arith.constant 0 : index
    %c0_5 = arith.constant 0 : index
    %5 = vector.load %arg3[%c0_4, %c0_5] : memref<256x128xbf16, #tpu.memory_space<vmem>>, vector<256x128xbf16>
    %cst = arith.constant dense<0.000000e+00> : vector<128x128xf32>
    %6 = tpu.matmul %4, %5, %cst {dimension_numbers = #tpu.dot_dimension_numbers<[1], [0], [0], [1], [0, 0, 1, 1], [], []>} : vector<128x256xbf16>, vector<256x128xbf16>, vector<128x128xf32> -> vector<128x128xf32>
    %7 = arith.addf %3, %6 : vector<128x128xf32>
    %c0_6 = arith.constant 0 : index
    %c0_7 = arith.constant 0 : index
    %8 = vector.load %arg6[%c0_6, %c0_7] : memref<128x128xf32, #tpu.memory_space<vmem>>, vector<128x128xf32>
    tpu.vector_store %arg6[%c0_6, %c0_7], %7 {strides = array<i32>} : memref<128x128xf32, #tpu.memory_space<vmem>>, vector<128x128xf32>,
    %c0_i32_8 = arith.constant 0 : i32
    %9 = arith.cmpi eq, %arg1, %c0_i32_8 : i32
    %10 = arith.extui %9 : i1 to i32
    %c0_i32_9 = arith.constant 0 : i32
    %11 = arith.cmpi ne, %10, %c0_i32_9 : i32
    scf.if %11 {
      %c0_10 = arith.constant 0 : index
      %c0_11 = arith.constant 0 : index
      %12 = vector.load %arg6[%c0_10, %c0_11] : memref<128x128xf32, #tpu.memory_space<vmem>>, vector<128x128xf32>
      %c0_12 = arith.constant 0 : index
      %c0_13 = arith.constant 0 : index
      %13 = vector.load %arg4[%c0_12, %c0_13] : memref<1x128xf32, #tpu.memory_space<vmem>>, vector<1x128xf32>
      %14 = vector.broadcast %13 : vector<1x128xf32> to vector<128x128xf32>
      %15 = arith.addf %12, %14 : vector<128x128xf32>
      %c0_14 = arith.constant 0 : index
      %c0_15 = arith.constant 0 : index
      %16 = vector.load %arg5[%c0_14, %c0_15] : memref<128x128xf32, #tpu.memory_space<vmem>>, vector<128x128xf32>
      tpu.vector_store %arg5[%c0_14, %c0_15], %15 {strides = array<i32>} : memref<128x128xf32, #tpu.memory_space<vmem>>, vector<128x128xf32>,
    } else {
    }
    return
  }
  func.func @transform_0(%arg0: i32, %arg1: i32) -> (i32, i32) {
    %c0_i32 = arith.constant 0 : i32
    return %arg0, %arg1 : i32, i32
  }
  func.func @transform_1(%arg0: i32, %arg1: i32) -> (i32, i32) {
    %c0_i32 = arith.constant 0 : i32
    %c0_i32_0 = arith.constant 0 : i32
    return %arg1, %c0_i32 : i32, i32
  }
  func.func @transform_2(%arg0: i32, %arg1: i32) -> (i32, i32) {
    %c0_i32 = arith.constant 0 : i32
    %c0_i32_0 = arith.constant 0 : i32
    %c0_i32_1 = arith.constant 0 : i32
    return %c0_i32, %c0_i32_0 : i32, i32
  }
  func.func @transform_3(%arg0: i32, %arg1: i32) -> (i32, i32) {
    %c0_i32 = arith.constant 0 : i32
    %c0_i32_0 = arith.constant 0 : i32
    return %arg0, %c0_i32 : i32, i32
  }
}

</mosaic_0001>

<llo_original>
// kernel: tpu_custom_call.1
$region0: #{tpu_custom_call.1}
  #allocation0 [shape = 'u32[]', space=smem, size = 0x4, offset = 0x4, fixed_abs, tag = 'smem constant byte address 0x4 - core index']
  #allocation1 [shape = 'u32[72,128]{1,0:T(1,128)}', space=vmem, size = 0x9000, scoped, tag = 'internal scratch']
  #allocation2 [shape = 'f32[128,128]{1,0:T(8,128)}', space=vmem, size = 0x10000, scoped, tag = 'scratch operand']
  %s0 = inlined_call_operand.hbm [shape: bf16[256,256], index: 0, kind: input, shape index: {}]
  %s1 = inlined_call_operand.hbm [shape: bf16[256,128], index: 1, kind: input, shape index: {}]
  %s2 = inlined_call_operand.vmem [shape: f32[1,128], index: 2, kind: input, shape index: {}]
  %s3 = inlined_call_operand.hbm [shape: f32[256,128], index: 3, kind: output, shape index: {}]
  %s4 = sld [smem:[#allocation0]]
  $region61: #{tpu_custom_call.1} parent=0
    _
  %s6 = ssub.s32 1, %s4
  %s7 = scalar_select 0, %s6, %s4
  $region1: #{tpu_custom_call.1} parent=0
    #allocation3 [shape = 'u8[131072]{0}', space=vmem, size = 0x20000, scoped, tag = 'input window, operand 0']
    #allocation4 [shape = 's32[2]{0}', space=sflag, size = 0x8, scoped, tag = 'scoped memory for tpu_custom_call.1']
    #allocation5 [shape = 's32[2]{0}', space=sflag, size = 0x8, scoped, tag = 'scoped memory for tpu_custom_call.1']
    #allocation6 [shape = 'u8[65536]{0}', space=vmem, size = 0x10000, scoped, tag = 'input window, operand 1, single buffered']
    #allocation7 [shape = 's32[1]{0}', space=sflag, size = 0x4, scoped, tag = 'scoped memory for tpu_custom_call.1']
    #allocation8 [shape = 'u8[131072]{0}', space=vmem, size = 0x20000, scoped, tag = 'output window, operand 0']
    %8 = vsyncpa [#allocation4], 0
    %s9 = scalar_lea.sflag [#allocation4], 1
    %10 = vsyncpa %s9, 0
    %11 = vsyncpa [#allocation7], 0
    %12 = vsyncpa [#allocation5], 0
    %s13 = scalar_lea.sflag [#allocation5], 1
    %14 = vsyncpa %s13, 0
    loop: start=0, step=1, limit=4
    $region2: #{tpu_custom_call.1} parent=1 // loop_pre_header
      _
    $region3: #{tpu_custom_call.1} parent=1 // loop_header
      %s16 = sphi 0, %s20
      %p17 = scmp.ge.s32.totalorder %s16, 4
      %s23 = sphi 0, %s35
      %s24 = sphi 0, %s31
      %s25 = sphi 0, %s23
      %s26 = sphi 0, %s24
      %s27 = sphi 0, %s25
      %s28 = sphi 0, %s26
      %s40 = sphi 0, %s42
      %s43 = sphi 0, %s40
      %s44 = sphi 0, %s43
      %s60 = sphi 0, %s44
      %s66 = sphi 0, %s68
      %s69 = sphi 0, %s66
      %s70 = sphi 0, %s69
      %s86 = sphi 0, %s70
      %s90 = sphi 0, %s90
      %s92 = sphi 0, %s90
      %s93 = sphi 0, %s92
      %s107 = sphi 0, %s93
      %s113 = sphi 0, %s115
      %s116 = sphi 0, %s113
      %s117 = sphi 0, %s116
      %s133 = sphi 0, %s117
    $region4: #{tpu_custom_call.1} parent=1 // loop_header_branch
      %19 = sbr.rel (%p17) target = $region8
    $region5: #{tpu_custom_call.1} parent=1 // loop_body
      %s21 = ssub.s32 %s16, 1
      %s22 = ssub.s32 %s16, 2
      %s29 = sadd.s32 1, %s24
      %p30 = scmp.ge.s32.totalorder %s29, 1
      %s31 = scalar_select %p30, 0, %s29
      %s32 = sadd.s32 1, %s23
      %s33 = scalar_select %p30, %s32, %s23
      %p34 = scmp.ge.s32.totalorder %s33, 2
      %s35 = scalar_select %p34, 0, %s33
      %s36 = ssub.s32 %s23, %s35
      %s37 = ssub.s32 %s24, %s31
      %s38 = sor.u32 %s36, %s37
      %p39 = scmp.eq.s32.totalorder %s38, 0
      %s41 = sadd.s32 %s40, 1
      %s42 = scalar_select %p39, %s40, %s41
      %p45 = pneg %p39
      %p46 = scmp.eq.s32.totalorder %s16, 1
      %p47 = por %p45, %p46
      %p48 = scmp.ne.s32.totalorder %s40, %s43
      %p49 = scmp.eq.s32.totalorder %s16, 0
      %p50 = por %p48, %p49
      %p51 = scmp.ne.s32.totalorder %s40, %s43
      %p52 = scmp.eq.s32.totalorder %s21, 1
      %p53 = por %p51, %p52
      %p54 = scmp.ne.s32.totalorder %s43, %s44
      %p55 = scmp.eq.s32.totalorder %s21, 0
      %p56 = por %p54, %p55
      %p57 = scmp.ne.s32.totalorder %s43, %s44
      %p58 = scmp.eq.s32.totalorder %s22, 1
      %p59 = por %p57, %p58
      %p61 = scmp.ne.s32.totalorder %s44, %s60
      %p62 = scmp.eq.s32.totalorder %s22, 0
      %p63 = por %p61, %p62
      %s64 = ssub.s32 %s24, %s31
      %p65 = scmp.eq.s32.totalorder %s64, 0
      %s67 = sadd.s32 %s66, 1
      %s68 = scalar_select %p65, %s66, %s67
      %p71 = pneg %p65
      %p72 = scmp.eq.s32.totalorder %s16, 1
      %p73 = por %p71, %p72
      %p74 = scmp.ne.s32.totalorder %s66, %s69
      %p75 = scmp.eq.s32.totalorder %s16, 0
      %p76 = por %p74, %p75
      %p77 = scmp.ne.s32.totalorder %s66, %s69
      %p78 = scmp.eq.s32.totalorder %s21, 1
      %p79 = por %p77, %p78
      %p80 = scmp.ne.s32.totalorder %s69, %s70
      %p81 = scmp.eq.s32.totalorder %s21, 0
      %p82 = por %p80, %p81
      %p83 = scmp.ne.s32.totalorder %s69, %s70
      %p84 = scmp.eq.s32.totalorder %s22, 1
      %p85 = por %p83, %p84
      %p87 = scmp.ne.s32.totalorder %s70, %s86
      %p88 = scmp.eq.s32.totalorder %s22, 0
      %p89 = por %p87, %p88
      %s91 = sadd.s32 %s90, 1
      %p94 = scmp.eq.s32.totalorder %s16, 1
      %p95 = scmp.ne.s32.totalorder %s90, %s92
      %p96 = scmp.eq.s32.totalorder %s16, 0
      %p97 = por %p95, %p96
      %p98 = scmp.ne.s32.totalorder %s90, %s92
      %p99 = scmp.eq.s32.totalorder %s21, 1
      %p100 = por %p98, %p99
      %p101 = scmp.ne.s32.totalorder %s92, %s93
      %p102 = scmp.eq.s32.totalorder %s21, 0
      %p103 = por %p101, %p102
      %p104 = scmp.ne.s32.totalorder %s92, %s93
      %p105 = scmp.eq.s32.totalorder %s22, 1
      %p106 = por %p104, %p105
      %p108 = scmp.ne.s32.totalorder %s93, %s107
      %p109 = scmp.eq.s32.totalorder %s22, 0
      %p110 = por %p108, %p109
      %s111 = ssub.s32 %s23, %s35
      %p112 = scmp.eq.s32.totalorder %s111, 0
      %s114 = sadd.s32 %s113, 1
      %s115 = scalar_select %p112, %s113, %s114
      %p118 = pneg %p112
      %p119 = scmp.eq.s32.totalorder %s16, 1
      %p120 = por %p118, %p119
      %p121 = scmp.ne.s32.totalorder %s113, %s116
      %p122 = scmp.eq.s32.totalorder %s16, 0
      %p123 = por %p121, %p122
      %p124 = scmp.ne.s32.totalorder %s113, %s116
      %p125 = scmp.eq.s32.totalorder %s21, 1
      %p126 = por %p124, %p125
      %p127 = scmp.ne.s32.totalorder %s116, %s117
      %p128 = scmp.eq.s32.totalorder %s21, 0
      %p129 = por %p127, %p128
      %p130 = scmp.ne.s32.totalorder %s116, %s117
      %p131 = scmp.eq.s32.totalorder %s22, 1
      %p132 = por %p130, %p131
      %p134 = scmp.ne.s32.totalorder %s117, %s133
      %p135 = scmp.eq.s32.totalorder %s22, 0
      %p136 = por %p134, %p135
      %p137 = scmp.le.s32.totalorder 1, %s16
      %p138 = scmp.lt.s32.totalorder %s16, 3
      %p139 = pnand %p137, %p138
      %p140 = pneg %p139
      // Predicated region
      $region9: #{tpu_custom_call.1} parent=5 // pred_check
        _
      $region10: #{tpu_custom_call.1} parent=5 // pred_check_branch
        %142 = sbr.rel (%p139) target = $region12
      $region11: #{tpu_custom_call.1} parent=5 // pred_region
        %s143 = ssub.s32 %s16, 1
        // Predicated region
        $region13: #{tpu_custom_call.1} parent=11 // pred_check
          %p144 = pneg %p82
        $region14: #{tpu_custom_call.1} parent=11 // pred_check_branch
          %146 = sbr.rel (%p144) target = $region16
        $region15: #{tpu_custom_call.1} parent=11 // pred_region
          %s147 = smul.u32 32, %s26
          %149 = vsyncadd [#allocation7], 0
          %s150 = smul.addr %s147, 4
          %s151 = scalar_lea.hbm %s1, %s150
          %s152 = sshll.u32 %s151, 4
          %s153 = int_to_ptr.hbm [resolvable:$true] %s152
          %s154 = sshll.u32 [#allocation6], 4
          %s155 = int_to_ptr.vmem [resolvable:$true] %s154
          %160 = dma.hbm_to_vmem [thread:$0]  %s153, 2048, %s155, [#allocation7], 64, 64, 4
        $region16: #{tpu_custom_call.1} parent=11 // pred_fallthru
          _
        // Predicated region
        $region17: #{tpu_custom_call.1} parent=11 // pred_check
          %p161 = pneg %p103
        $region18: #{tpu_custom_call.1} parent=11 // pred_check_branch
          %163 = sbr.rel (%p161) target = $region20
        $region19: #{tpu_custom_call.1} parent=11 // pred_region
          _
        $region20: #{tpu_custom_call.1} parent=11 // pred_fallthru
          _
      $region12: #{tpu_custom_call.1} parent=5 // pred_fallthru
        _
      %p164 = scmp.lt.s32.totalorder %s16, 2
      // Predicated region
      $region21: #{tpu_custom_call.1} parent=5 // pred_check
        %p165 = pneg %p164
      $region22: #{tpu_custom_call.1} parent=5 // pred_check_branch
        %167 = sbr.rel (%p165) target = $region24
      $region23: #{tpu_custom_call.1} parent=5 // pred_region
        // Predicated region
        $region25: #{tpu_custom_call.1} parent=23 // pred_check
          %p168 = pneg %p50
        $region26: #{tpu_custom_call.1} parent=23 // pred_check_branch
          %170 = sbr.rel (%p168) target = $region28
        $region27: #{tpu_custom_call.1} parent=23 // pred_region
          %s171 = sand.u32 %s40, 1
          %s172 = scalar_lea.sflag [#allocation4], %s171
          %s173 = sand.u32 %s40, 1
          %s174 = smul.addr %s173, 128
          %s175 = scalar_lea.vmem [#allocation3], %s174
          %s176 = smul.u32 16, %s23
          %s177 = smul.u32 2, %s24
          %179 = vsyncadd %s172, 0
          %s180 = smul.addr %s176, 2
          %s181 = sadd.s32 %s177, %s180
          %s182 = smul.addr %s181, 4
          %s183 = scalar_lea.hbm %s0, %s182
          %s184 = sshll.u32 %s183, 4
          %s185 = int_to_ptr.hbm [resolvable:$true] %s184
          %s186 = sshll.u32 %s175, 4
          %s187 = int_to_ptr.vmem [resolvable:$true] %s186
          %192 = dma.hbm_to_vmem [thread:$0]  %s185, 2048, %s187, %s172, 128, 128, 8
        $region28: #{tpu_custom_call.1} parent=23 // pred_fallthru
          _
      $region24: #{tpu_custom_call.1} parent=5 // pred_fallthru
        _
      %p193 = scmp.le.s32.totalorder 1, %s16
      %p194 = scmp.lt.s32.totalorder %s16, 3
      %p195 = pnand %p193, %p194
      %p196 = pneg %p195
      // Predicated region
      $region29: #{tpu_custom_call.1} parent=5 // pred_check
        _
      $region30: #{tpu_custom_call.1} parent=5 // pred_check_branch
        %198 = sbr.rel (%p195) target = $region32
      $region31: #{tpu_custom_call.1} parent=5 // pred_region
        %s199 = ssub.s32 %s16, 1
        %s200 = sand.u32 %s43, 1
        %s201 = scalar_lea.sflag [#allocation4], %s200
        %s202 = sand.u32 %s43, 1
        %s203 = smul.addr %s202, 128
        %s204 = scalar_lea.vmem [#allocation3], %s203
        // Predicated region
        $region33: #{tpu_custom_call.1} parent=31 // pred_check
          %p205 = pneg %p56
        $region34: #{tpu_custom_call.1} parent=31 // pred_check_branch
          %207 = sbr.rel (%p205) target = $region36
        $region35: #{tpu_custom_call.1} parent=31 // pred_region
          %209 = dma.done %s201, 2048
        $region36: #{tpu_custom_call.1} parent=31 // pred_fallthru
          _
        // Predicated region
        $region37: #{tpu_custom_call.1} parent=31 // pred_check
          %p210 = pneg %p82
        $region38: #{tpu_custom_call.1} parent=31 // pred_check_branch
          %212 = sbr.rel (%p210) target = $region40
        $region39: #{tpu_custom_call.1} parent=31 // pred_region
          %214 = dma.done [#allocation7], 2048
        $region40: #{tpu_custom_call.1} parent=31 // pred_fallthru
          _
        %s215 = sand.u32 %s43, 1
        %s216 = scalar_lea.sflag [#allocation4], %s215
        %s217 = sand.u32 %s43, 1
        %s218 = smul.addr %s217, 128
        %s219 = scalar_lea.vmem [#allocation3], %s218
        %p220 = pneg %p56
        %p221 = pneg %p53
        %p222 = pneg %p82
        %p223 = pneg %p79
        %p224 = pneg %p103
        %p225 = pneg %p100
        %p226 = pneg %p129
        %p227 = pneg %p126
        %s228 = sand.u32 %s116, 1
        %s229 = scalar_lea.sflag [#allocation5], %s228
        %s230 = sand.u32 %s116, 1
        %s231 = smul.addr %s230, 128
        %s232 = scalar_lea.vmem [#allocation8], %s231
        %s233 = smul.u32 16, %s25
        %s234 = smul.u32 2, %s26
        %s235 = smul.u32 32, %s26
        %s236 = smul.u32 16, %s25
        %p237 = scmp.eq.s32.totalorder %s26, 0
        // Predicated region
        $region41: #{tpu_custom_call.1} parent=31 // pred_check
          %p238 = pneg %p237
        $region42: #{tpu_custom_call.1} parent=31 // pred_check_branch
          %240 = sbr.rel (%p238) target = $region44
        $region43: #{tpu_custom_call.1} parent=31 // pred_region
          %241 = vst [vmem:[#allocation2] sm:$0xff] 0.0
          %242 = vst [vmem:[#allocation2 + $0x8] sm:$0xff] 0.0
          %243 = vst [vmem:[#allocation2 + $0x10] sm:$0xff] 0.0
          %244 = vst [vmem:[#allocation2 + $0x18] sm:$0xff] 0.0
          %245 = vst [vmem:[#allocation2 + $0x20] sm:$0xff] 0.0
          %246 = vst [vmem:[#allocation2 + $0x28] sm:$0xff] 0.0
          %247 = vst [vmem:[#allocation2 + $0x30] sm:$0xff] 0.0
          %248 = vst [vmem:[#allocation2 + $0x38] sm:$0xff] 0.0
          %249 = vst [vmem:[#allocation2 + $0x40] sm:$0xff] 0.0
          %250 = vst [vmem:[#allocation2 + $0x48] sm:$0xff] 0.0
          %251 = vst [vmem:[#allocation2 + $0x50] sm:$0xff] 0.0
          %252 = vst [vmem:[#allocation2 + $0x58] sm:$0xff] 0.0
          %253 = vst [vmem:[#allocation2 + $0x60] sm:$0xff] 0.0
          %254 = vst [vmem:[#allocation2 + $0x68] sm:$0xff] 0.0
          %255 = vst [vmem:[#allocation2 + $0x70] sm:$0xff] 0.0
          %256 = vst [vmem:[#allocation2 + $0x78] sm:$0xff] 0.0
        $region44: #{tpu_custom_call.1} parent=31 // pred_fallthru
          _
        %v257 = vld [vmem:[#allocation2] sm:$0xff]
        %v258 = vld [vmem:[#allocation2 + $0x8] sm:$0xff]
        %v259 = vld [vmem:[#allocation2 + $0x10] sm:$0xff]
        %v260 = vld [vmem:[#allocation2 + $0x18] sm:$0xff]
        %v261 = vld [vmem:[#allocation2 + $0x20] sm:$0xff]
        %v262 = vld [vmem:[#allocation2 + $0x28] sm:$0xff]
        %v263 = vld [vmem:[#allocation2 + $0x30] sm:$0xff]
        %v264 = vld [vmem:[#allocation2 + $0x38] sm:$0xff]
        %v265 = vld [vmem:[#allocation2 + $0x40] sm:$0xff]
        %v266 = vld [vmem:[#allocation2 + $0x48] sm:$0xff]
        %v267 = vld [vmem:[#allocation2 + $0x50] sm:$0xff]
        %v268 = vld [vmem:[#allocation2 + $0x58] sm:$0xff]
        %v269 = vld [vmem:[#allocation2 + $0x60] sm:$0xff]
        %v270 = vld [vmem:[#allocation2 + $0x68] sm:$0xff]
        %v271 = vld [vmem:[#allocation2 + $0x70] sm:$0xff]
        %v272 = vld [vmem:[#allocation2 + $0x78] sm:$0xff]
        %v273 = vld [vmem:[%s204] sm:$0xff]
        %v274 = vld [vmem:[%s204 + $0x8] sm:$0xff]
        %v275 = vld [vmem:[%s204 + $0x10] sm:$0xff]
        %v276 = vld [vmem:[%s204 + $0x18] sm:$0xff]
        %v277 = vld [vmem:[%s204 + $0x20] sm:$0xff]
        %v278 = vld [vmem:[%s204 + $0x28] sm:$0xff]
        %v279 = vld [vmem:[%s204 + $0x30] sm:$0xff]
        %v280 = vld [vmem:[%s204 + $0x38] sm:$0xff]
        %v281 = vld [vmem:[%s204 + $0x40] sm:$0xff]
        %v282 = vld [vmem:[%s204 + $0x48] sm:$0xff]
        %v283 = vld [vmem:[%s204 + $0x50] sm:$0xff]
        %v284 = vld [vmem:[%s204 + $0x58] sm:$0xff]
        %v285 = vld [vmem:[%s204 + $0x60] sm:$0xff]
        %v286 = vld [vmem:[%s204 + $0x68] sm:$0xff]
        %v287 = vld [vmem:[%s204 + $0x70] sm:$0xff]
        %v288 = vld [vmem:[%s204 + $0x78] sm:$0xff]
        %v289 = vld [vmem:[#allocation6] sm:$0xf]
        %v290 = vld [vmem:[#allocation6 + $0x4] sm:$0xf]
        %v291 = vld [vmem:[#allocation6 + $0x8] sm:$0xf]
        %v292 = vld [vmem:[#allocation6 + $0xc] sm:$0xf]
        %v293 = vld [vmem:[#allocation6 + $0x10] sm:$0xf]
        %v294 = vld [vmem:[#allocation6 + $0x14] sm:$0xf]
        %v295 = vld [vmem:[#allocation6 + $0x18] sm:$0xf]
        %v296 = vld [vmem:[#allocation6 + $0x1c] sm:$0xf]
        %v297 = vld [vmem:[#allocation6 + $0x20] sm:$0xf]
        %v298 = vld [vmem:[#allocation6 + $0x24] sm:$0xf]
        %v299 = vld [vmem:[#allocation6 + $0x28] sm:$0xf]
        %v300 = vld [vmem:[#allocation6 + $0x2c] sm:$0xf]
        %v301 = vld [vmem:[#allocation6 + $0x30] sm:$0xf]
        %v302 = vld [vmem:[#allocation6 + $0x34] sm:$0xf]
        %v303 = vld [vmem:[#allocation6 + $0x38] sm:$0xf]
        %v304 = vld [vmem:[#allocation6 + $0x3c] sm:$0xf]
        %v305 = vld [vmem:[#allocation6 + $0x40] sm:$0xf]
        %v306 = vld [vmem:[#allocation6 + $0x44] sm:$0xf]
        %v307 = vld [vmem:[#allocation6 + $0x48] sm:$0xf]
        %v308 = vld [vmem:[#allocation6 + $0x4c] sm:$0xf]
        %v309 = vld [vmem:[#allocation6 + $0x50] sm:$0xf]
        %v310 = vld [vmem:[#allocation6 + $0x54] sm:$0xf]
        %v311 = vld [vmem:[#allocation6 + $0x58] sm:$0xf]
        %v312 = vld [vmem:[#allocation6 + $0x5c] sm:$0xf]
        %v313 = vld [vmem:[#allocation6 + $0x60] sm:$0xf]
        %v314 = vld [vmem:[#allocation6 + $0x64] sm:$0xf]
        %v315 = vld [vmem:[#allocation6 + $0x68] sm:$0xf]
        %v316 = vld [vmem:[#allocation6 + $0x6c] sm:$0xf]
        %v317 = vld [vmem:[#allocation6 + $0x70] sm:$0xf]
        %v318 = vld [vmem:[#allocation6 + $0x74] sm:$0xf]
        %v319 = vld [vmem:[#allocation6 + $0x78] sm:$0xf]
        %v320 = vld [vmem:[#allocation6 + $0x7c] sm:$0xf]
        %v337 = vunpack.c.l.b16 %v273
        %v338 = vunpack.c.h.b16 %v273
        %v339 = vunpack.c.l.b16 %v274
        %v340 = vunpack.c.h.b16 %v274
        %v341 = vunpack.c.l.b16 %v275
        %v342 = vunpack.c.h.b16 %v275
        %v343 = vunpack.c.l.b16 %v276
        %v344 = vunpack.c.h.b16 %v276
        %v345 = vunpack.c.l.b16 %v277
        %v346 = vunpack.c.h.b16 %v277
        %v347 = vunpack.c.l.b16 %v278
        %v348 = vunpack.c.h.b16 %v278
        %v349 = vunpack.c.l.b16 %v279
        %v350 = vunpack.c.h.b16 %v279
        %v351 = vunpack.c.l.b16 %v280
        %v352 = vunpack.c.h.b16 %v280
        %v353 = vunpack.c.l.b16 %v281
        %v354 = vunpack.c.h.b16 %v281
        %v355 = vunpack.c.l.b16 %v282
        %v356 = vunpack.c.h.b16 %v282
        %v357 = vunpack.c.l.b16 %v283
        %v358 = vunpack.c.h.b16 %v283
        %v359 = vunpack.c.l.b16 %v284
        %v360 = vunpack.c.h.b16 %v284
        %v361 = vunpack.c.l.b16 %v285
        %v362 = vunpack.c.h.b16 %v285
        %v363 = vunpack.c.l.b16 %v286
        %v364 = vunpack.c.h.b16 %v286
        %v365 = vunpack.c.l.b16 %v287
        %v366 = vunpack.c.h.b16 %v287
        %v367 = vunpack.c.l.b16 %v288
        %v368 = vunpack.c.h.b16 %v288
        %v369 = vpack.c.b16 %v339, %v337
        %v370 = vpack.c.b16 %v340, %v338
        %v371 = vpack.c.b16 %v343, %v341
        %v372 = vpack.c.b16 %v344, %v342
        %v373 = vpack.c.b16 %v347, %v345
        %v374 = vpack.c.b16 %v348, %v346
        %v375 = vpack.c.b16 %v351, %v349
        %v376 = vpack.c.b16 %v352, %v350
        %v377 = vpack.c.b16 %v355, %v353
        %v378 = vpack.c.b16 %v356, %v354
        %v379 = vpack.c.b16 %v359, %v357
        %v380 = vpack.c.b16 %v360, %v358
        %v381 = vpack.c.b16 %v363, %v361
        %v382 = vpack.c.b16 %v364, %v362
        %v383 = vpack.c.b16 %v367, %v365
        %v384 = vpack.c.b16 %v368, %v366
        %v433 = vunpack.c.l.b16 %v289
        %v434 = vunpack.c.l.b16 %v290
        %v435 = vunpack.c.l.b16 %v291
        %v436 = vunpack.c.l.b16 %v292
        %v437 = vunpack.c.l.b16 %v293
        %v438 = vunpack.c.l.b16 %v294
        %v439 = vunpack.c.l.b16 %v295
        %v440 = vunpack.c.l.b16 %v296
        %v441 = vunpack.c.l.b16 %v297
        %v442 = vunpack.c.l.b16 %v298
        %v443 = vunpack.c.l.b16 %v299
        %v444 = vunpack.c.l.b16 %v300
        %v445 = vunpack.c.l.b16 %v301
        %v446 = vunpack.c.l.b16 %v302
        %v447 = vunpack.c.l.b16 %v303
        %v448 = vunpack.c.l.b16 %v304
        %v449 = vunpack.c.l.b16 %v305
        %v450 = vunpack.c.l.b16 %v306
        %v451 = vunpack.c.l.b16 %v307
        %v452 = vunpack.c.l.b16 %v308
        %v453 = vunpack.c.l.b16 %v309
        %v454 = vunpack.c.l.b16 %v310
        %v455 = vunpack.c.l.b16 %v311
        %v456 = vunpack.c.l.b16 %v312
        %v457 = vunpack.c.l.b16 %v313
        %v458 = vunpack.c.l.b16 %v314
        %v459 = vunpack.c.l.b16 %v315
        %v460 = vunpack.c.l.b16 %v316
        %v461 = vunpack.c.l.b16 %v317
        %v462 = vunpack.c.l.b16 %v318
        %v463 = vunpack.c.l.b16 %v319
        %v464 = vunpack.c.l.b16 %v320
        %v465 = vpack.c.b16 %v434, %v433
        %v466 = vpack.c.b16 %v436, %v435
        %v467 = vpack.c.b16 %v438, %v437
        %v468 = vpack.c.b16 %v440, %v439
        %v469 = vpack.c.b16 %v442, %v441
        %v470 = vpack.c.b16 %v444, %v443
        %v471 = vpack.c.b16 %v446, %v445
        %v472 = vpack.c.b16 %v448, %v447
        %v473 = vpack.c.b16 %v450, %v449
        %v474 = vpack.c.b16 %v452, %v451
        %v475 = vpack.c.b16 %v454, %v453
        %v476 = vpack.c.b16 %v456, %v455
        %v477 = vpack.c.b16 %v458, %v457
        %v478 = vpack.c.b16 %v460, %v459
        %v479 = vpack.c.b16 %v462, %v461
        %v480 = vpack.c.b16 %v464, %v463
        %497 = vmatpush.bf16.msra.mxu0 %v472
        %498 = vmatpush.bf16.msra.mxu0 %v471
        %499 = vmatpush.bf16.msra.mxu0 %v470
        %500 = vmatpush.bf16.msra.mxu0 %v469
        %501 = vmatpush.bf16.msra.mxu0 %v468
        %502 = vmatpush.bf16.msra.mxu0 %v467
        %503 = vmatpush.bf16.msra.mxu0 %v466
        %504 = vmatpush.bf16.msra.mxu0 %v465
        %505 = vmatmul.bf16.gmra.mxu0 %v369
        %v506 = vpop.f32.mrf.mxu0
        %v507 = vadd.f32 0.0, %v506
        %v508 = vpop.f32.mrf.mxu0
        %v509 = vadd.f32 0.0, %v508
        %510 = vmatmul.bf16.gmra.mxu0 %v371
        %v511 = vpop.f32.mrf.mxu0
        %v512 = vadd.f32 0.0, %v511
        %v513 = vpop.f32.mrf.mxu0
        %v514 = vadd.f32 0.0, %v513
        %515 = vmatmul.bf16.gmra.mxu0 %v373
        %v516 = vpop.f32.mrf.mxu0
        %v517 = vadd.f32 0.0, %v516
        %v518 = vpop.f32.mrf.mxu0
        %v519 = vadd.f32 0.0, %v518
        %520 = vmatmul.bf16.gmra.mxu0 %v375
        %v521 = vpop.f32.mrf.mxu0
        %v522 = vadd.f32 0.0, %v521
        %v523 = vpop.f32.mrf.mxu0
        %v524 = vadd.f32 0.0, %v523
        %525 = vmatmul.bf16.gmra.mxu0 %v377
        %v526 = vpop.f32.mrf.mxu0
        %v527 = vadd.f32 0.0, %v526
        %v528 = vpop.f32.mrf.mxu0
        %v529 = vadd.f32 0.0, %v528
        %530 = vmatmul.bf16.gmra.mxu0 %v379
        %v531 = vpop.f32.mrf.mxu0
        %v532 = vadd.f32 0.0, %v531
        %v533 = vpop.f32.mrf.mxu0
        %v534 = vadd.f32 0.0, %v533
        %535 = vmatmul.bf16.gmra.mxu0 %v381
        %v536 = vpop.f32.mrf.mxu0
        %v537 = vadd.f32 0.0, %v536
        %v538 = vpop.f32.mrf.mxu0
        %v539 = vadd.f32 0.0, %v538
        %540 = vmatmul.bf16.gmra.mxu0 %v383
        %v541 = vpop.f32.mrf.mxu0
        %v542 = vadd.f32 0.0, %v541
        %v543 = vpop.f32.mrf.mxu0
        %v544 = vadd.f32 0.0, %v543
        %545 = vdwg.mxu0
        %546 = vmatpush.bf16.msra.mxu0 %v480
        %547 = vmatpush.bf16.msra.mxu0 %v479
        %548 = vmatpush.bf16.msra.mxu0 %v478
        %549 = vmatpush.bf16.msra.mxu0 %v477
        %550 = vmatpush.bf16.msra.mxu0 %v476
        %551 = vmatpush.bf16.msra.mxu0 %v475
        %552 = vmatpush.bf16.msra.mxu0 %v474
        %553 = vmatpush.bf16.msra.mxu0 %v473
        %554 = vmatmul.bf16.gmra.mxu0 %v370
        %v555 = vpop.f32.mrf.mxu0
        %v556 = vadd.f32 %v507, %v555
        %v557 = vpop.f32.mrf.mxu0
        %v558 = vadd.f32 %v509, %v557
        %559 = vmatmul.bf16.gmra.mxu0 %v372
        %v560 = vpop.f32.mrf.mxu0
        %v561 = vadd.f32 %v512, %v560
        %v562 = vpop.f32.mrf.mxu0
        %v563 = vadd.f32 %v514, %v562
        %564 = vmatmul.bf16.gmra.mxu0 %v374
        %v565 = vpop.f32.mrf.mxu0
        %v566 = vadd.f32 %v517, %v565
        %v567 = vpop.f32.mrf.mxu0
        %v568 = vadd.f32 %v519, %v567
        %569 = vmatmul.bf16.gmra.mxu0 %v376
        %v570 = vpop.f32.mrf.mxu0
        %v571 = vadd.f32 %v522, %v570
        %v572 = vpop.f32.mrf.mxu0
        %v573 = vadd.f32 %v524, %v572
        %574 = vmatmul.bf16.gmra.mxu0 %v378
        %v575 = vpop.f32.mrf.mxu0
        %v576 = vadd.f32 %v527, %v575
        %v577 = vpop.f32.mrf.mxu0
        %v578 = vadd.f32 %v529, %v577
        %579 = vmatmul.bf16.gmra.mxu0 %v380
        %v580 = vpop.f32.mrf.mxu0
        %v581 = vadd.f32 %v532, %v580
        %v582 = vpop.f32.mrf.mxu0
        %v583 = vadd.f32 %v534, %v582
        %584 = vmatmul.bf16.gmra.mxu0 %v382
        %v585 = vpop.f32.mrf.mxu0
        %v586 = vadd.f32 %v537, %v585
        %v587 = vpop.f32.mrf.mxu0
        %v588 = vadd.f32 %v539, %v587
        %589 = vmatmul.bf16.gmra.mxu0 %v384
        %v590 = vpop.f32.mrf.mxu0
        %v591 = vadd.f32 %v542, %v590
        %v592 = vpop.f32.mrf.mxu0
        %v593 = vadd.f32 %v544, %v592
        %594 = vdwg.mxu0
        %v595 = vadd.f32 %v257, %v556
        %v596 = vadd.f32 %v258, %v558
        %v597 = vadd.f32 %v259, %v561
        %v598 = vadd.f32 %v260, %v563
        %v599 = vadd.f32 %v261, %v566
        %v600 = vadd.f32 %v262, %v568
        %v601 = vadd.f32 %v263, %v571
        %v602 = vadd.f32 %v264, %v573
        %v603 = vadd.f32 %v265, %v576
        %v604 = vadd.f32 %v266, %v578
        %v605 = vadd.f32 %v267, %v581
        %v606 = vadd.f32 %v268, %v583
        %v607 = vadd.f32 %v269, %v586
        %v608 = vadd.f32 %v270, %v588
        %v609 = vadd.f32 %v271, %v591
        %v610 = vadd.f32 %v272, %v593
        %611 = vst [vmem:[#allocation2] sm:$0xff] %v595
        %612 = vst [vmem:[#allocation2 + $0x8] sm:$0xff] %v596
        %613 = vst [vmem:[#allocation2 + $0x10] sm:$0xff] %v597
        %614 = vst [vmem:[#allocation2 + $0x18] sm:$0xff] %v598
        %615 = vst [vmem:[#allocation2 + $0x20] sm:$0xff] %v599
        %616 = vst [vmem:[#allocation2 + $0x28] sm:$0xff] %v600
        %617 = vst [vmem:[#allocation2 + $0x30] sm:$0xff] %v601
        %618 = vst [vmem:[#allocation2 + $0x38] sm:$0xff] %v602
        %619 = vst [vmem:[#allocation2 + $0x40] sm:$0xff] %v603
        %620 = vst [vmem:[#allocation2 + $0x48] sm:$0xff] %v604
        %621 = vst [vmem:[#allocation2 + $0x50] sm:$0xff] %v605
        %622 = vst [vmem:[#allocation2 + $0x58] sm:$0xff] %v606
        %623 = vst [vmem:[#allocation2 + $0x60] sm:$0xff] %v607
        %624 = vst [vmem:[#allocation2 + $0x68] sm:$0xff] %v608
        %625 = vst [vmem:[#allocation2 + $0x70] sm:$0xff] %v609
        %626 = vst [vmem:[#allocation2 + $0x78] sm:$0xff] %v610
        // Predicated region
        $region45: #{tpu_custom_call.1} parent=31 // pred_check
          %p627 = pneg %p237
        $region46: #{tpu_custom_call.1} parent=31 // pred_check_branch
          %629 = sbr.rel (%p627) target = $region48
        $region47: #{tpu_custom_call.1} parent=31 // pred_region
          %v630 = vld [vmem:[#allocation2] sm:$0xff]
          %v631 = vld [vmem:[#allocation2 + $0x8] sm:$0xff]
          %v632 = vld [vmem:[#allocation2 + $0x10] sm:$0xff]
          %v633 = vld [vmem:[#allocation2 + $0x18] sm:$0xff]
          %v634 = vld [vmem:[#allocation2 + $0x20] sm:$0xff]
          %v635 = vld [vmem:[#allocation2 + $0x28] sm:$0xff]
          %v636 = vld [vmem:[#allocation2 + $0x30] sm:$0xff]
          %v637 = vld [vmem:[#allocation2 + $0x38] sm:$0xff]
          %v638 = vld [vmem:[#allocation2 + $0x40] sm:$0xff]
          %v639 = vld [vmem:[#allocation2 + $0x48] sm:$0xff]
          %v640 = vld [vmem:[#allocation2 + $0x50] sm:$0xff]
          %v641 = vld [vmem:[#allocation2 + $0x58] sm:$0xff]
          %v642 = vld [vmem:[#allocation2 + $0x60] sm:$0xff]
          %v643 = vld [vmem:[#allocation2 + $0x68] sm:$0xff]
          %v644 = vld [vmem:[#allocation2 + $0x70] sm:$0xff]
          %v645 = vld [vmem:[#allocation2 + $0x78] sm:$0xff]
          %v646 = vld [vmem:[%s2] sm:$0x1]
          %v648 = vperm.slane %v646, 0
          %v650 = vadd.f32 %v630, %v648
          %v651 = vadd.f32 %v631, %v648
          %v652 = vadd.f32 %v632, %v648
          %v653 = vadd.f32 %v633, %v648
          %v654 = vadd.f32 %v634, %v648
          %v655 = vadd.f32 %v635, %v648
          %v656 = vadd.f32 %v636, %v648
          %v657 = vadd.f32 %v637, %v648
          %v658 = vadd.f32 %v638, %v648
          %v659 = vadd.f32 %v639, %v648
          %v660 = vadd.f32 %v640, %v648
          %v661 = vadd.f32 %v641, %v648
          %v662 = vadd.f32 %v642, %v648
          %v663 = vadd.f32 %v643, %v648
          %v664 = vadd.f32 %v644, %v648
          %v665 = vadd.f32 %v645, %v648
          %666 = vst [vmem:[%s232] sm:$0xff] %v650
          %667 = vst [vmem:[%s232 + $0x8] sm:$0xff] %v651
          %668 = vst [vmem:[%s232 + $0x10] sm:$0xff] %v652
          %669 = vst [vmem:[%s232 + $0x18] sm:$0xff] %v653
          %670 = vst [vmem:[%s232 + $0x20] sm:$0xff] %v654
          %671 = vst [vmem:[%s232 + $0x28] sm:$0xff] %v655
          %672 = vst [vmem:[%s232 + $0x30] sm:$0xff] %v656
          %673 = vst [vmem:[%s232 + $0x38] sm:$0xff] %v657
          %674 = vst [vmem:[%s232 + $0x40] sm:$0xff] %v658
          %675 = vst [vmem:[%s232 + $0x48] sm:$0xff] %v659
          %676 = vst [vmem:[%s232 + $0x50] sm:$0xff] %v660
          %677 = vst [vmem:[%s232 + $0x58] sm:$0xff] %v661
          %678 = vst [vmem:[%s232 + $0x60] sm:$0xff] %v662
          %679 = vst [vmem:[%s232 + $0x68] sm:$0xff] %v663
          %680 = vst [vmem:[%s232 + $0x70] sm:$0xff] %v664
          %681 = vst [vmem:[%s232 + $0x78] sm:$0xff] %v665
        $region48: #{tpu_custom_call.1} parent=31 // pred_fallthru
          _
        %s682 = sand.u32 %s116, 1
        %s683 = scalar_lea.sflag [#allocation5], %s682
        %s684 = sand.u32 %s116, 1
        %s685 = smul.addr %s684, 128
        %s686 = scalar_lea.vmem [#allocation8], %s685
        // Predicated region
        $region49: #{tpu_custom_call.1} parent=31 // pred_check
          %p687 = pneg %p126
        $region50: #{tpu_custom_call.1} parent=31 // pred_check_branch
          %689 = sbr.rel (%p687) target = $region52
        $region51: #{tpu_custom_call.1} parent=31 // pred_region
          %s690 = smul.u32 16, %s25
          %692 = vsyncadd %s683, 0
          %s693 = smul.addr %s690, 8
          %s694 = scalar_lea.hbm %s3, %s693
          %s695 = sshll.u32 %s686, 4
          %s696 = int_to_ptr.vmem [resolvable:$true] %s695
          %s697 = sshll.u32 %s694, 4
          %s698 = int_to_ptr.hbm [resolvable:$true] %s697
          %703 = dma.vmem_to_hbm [thread:$0]  %s696, 2048, %s698, %s683, 128, 128, 8
        $region52: #{tpu_custom_call.1} parent=31 // pred_fallthru
          _
      $region32: #{tpu_custom_call.1} parent=5 // pred_fallthru
        _
      %p704 = scmp.le.s32.totalorder 2, %s16
      // Predicated region
      $region53: #{tpu_custom_call.1} parent=5 // pred_check
        %p705 = pneg %p704
      $region54: #{tpu_custom_call.1} parent=5 // pred_check_branch
        %707 = sbr.rel (%p705) target = $region56
      $region55: #{tpu_custom_call.1} parent=5 // pred_region
        %s708 = ssub.s32 %s16, 2
        // Predicated region
        $region57: #{tpu_custom_call.1} parent=55 // pred_check
          %p709 = pneg %p132
        $region58: #{tpu_custom_call.1} parent=55 // pred_check_branch
          %711 = sbr.rel (%p709) target = $region60
        $region59: #{tpu_custom_call.1} parent=55 // pred_region
          %s712 = sand.u32 %s117, 1
          %s713 = scalar_lea.sflag [#allocation5], %s712
          %s714 = sand.u32 %s117, 1
          %s715 = smul.addr %s714, 128
          %s716 = scalar_lea.vmem [#allocation8], %s715
          %718 = dma.done %s713, 2048
        $region60: #{tpu_custom_call.1} parent=55 // pred_fallthru
          _
      $region56: #{tpu_custom_call.1} parent=5 // pred_fallthru
        _
    $region6: #{tpu_custom_call.1} parent=1 // loop_footer
      %s20 = sadd.s32 1, %s16
    $region7: #{tpu_custom_call.1} parent=1 // loop_footer_branch
      %15 = sbr.rel target = $region3
    $region8: #{tpu_custom_call.1} parent=1 // loop_exit
      _
    %719 = vsyncpa [#allocation4], 1
    %s720 = scalar_lea.sflag [#allocation4], 1
    %721 = vsyncpa %s720, 1
    %722 = vsyncpa [#allocation7], 1
    %723 = vsyncpa [#allocation5], 1
    %s724 = scalar_lea.sflag [#allocation5], 1
    %725 = vsyncpa %s724, 1

</llo_original>
